<compile_context>
chip_gen: v7x
topology: tpu7x:2x2x1
jax: 0.10.0
libtpu: 0.0.40
codegen_flags: <defaults>
</compile_context>

<pallas_src>
import functools

import jax
import jax.numpy as jnp
from jax.experimental import pallas as pl
from jax.experimental.pallas import tpu as pltpu


def _layernorm_kernel(x_ref, alpha_ref, beta_ref, o_ref, *, epsilon, dim):
    # x_ref: (rows_tile, D) tile of the flattened (B*T, D) input.
    x = x_ref[...].astype(jnp.float32)

    # Hoisted, per-grid-step f32 copies of the affine params (shape (1, D)).
    alpha = alpha_ref[...].astype(jnp.float32)
    beta = beta_ref[...].astype(jnp.float32)

    inv_d = jnp.float32(1.0 / dim)
    # Fused single-pass statistics: one sweep for sum(x) and sum(x*x).
    mean = jnp.sum(x, axis=-1, keepdims=True) * inv_d
    mean_sq = jnp.sum(x * x, axis=-1, keepdims=True) * inv_d
    var = jnp.maximum(mean_sq - mean * mean, 0.0)     # biased variance (matches torch ref)
    inv_std = jax.lax.rsqrt(var + epsilon)            # rsqrt lands on the EUP slot

    y = (x - mean) * inv_std
    o_ref[...] = (y * alpha + beta).astype(o_ref.dtype)


def _pick_rows_tile(rows, dim, itemsize, vmem_budget_bytes):
    """Pick a large row tile that keeps double-buffered in/out + f32 work in budget."""
    # Sublane packing multiple: 8 rows for 4-byte, 16 for 2-byte, 32 for 1-byte dtypes.
    sublane = max(8, 32 // max(int(itemsize), 1))
    # Per row in VMEM: 2x input buf + 2x output buf (double-buffered, x.dtype)
    # plus roughly one f32 working copy.
    bytes_per_row = dim * (4 * itemsize + 4)
    rows_tile = vmem_budget_bytes // max(bytes_per_row, 1)
    rows_tile = int(min(max(rows_tile, sublane), 1024))
    rows_tile = (rows_tile // sublane) * sublane
    return max(rows_tile, sublane)


def layer_norm_temporal(x, alpha, beta, *, epsilon=1e-5, rows_tile=None,
                        vmem_budget_bytes=8 * 1024 * 1024):
    """x: (B, T, D); alpha/beta: (1, 1, D). Returns (B, T, D)."""
    B, T, D = x.shape
    rows = B * T

    x2 = x.reshape(rows, D)
    a2 = alpha.reshape(1, D)
    b2 = beta.reshape(1, D)

    itemsize = jnp.dtype(x.dtype).itemsize
    if rows_tile is None:
        rows_tile = _pick_rows_tile(rows, D, itemsize, vmem_budget_bytes)

    if rows <= rows_tile:
        # Single block covering all rows (block equal to full array dim is allowed).
        rows_tile = rows
        grid = (1,)
    else:
        # Masked edge block handles the tail — no divisibility requirement.
        grid = (pl.cdiv(rows, rows_tile),)

    kernel = functools.partial(_layernorm_kernel, epsilon=epsilon, dim=D)

    out = pl.pallas_call(
        kernel,
        out_shape=jax.ShapeDtypeStruct((rows, D), x.dtype),
        grid_spec=pltpu.PrefetchScalarGridSpec(
            num_scalar_prefetch=0,
            grid=grid,
            in_specs=[
                pl.BlockSpec((rows_tile, D), lambda i: (i, 0)),  # x tile
                pl.BlockSpec((1, D), lambda i: (0, 0)),          # alpha (broadcast)
                pl.BlockSpec((1, D), lambda i: (0, 0)),          # beta  (broadcast)
            ],
            out_specs=pl.BlockSpec((rows_tile, D), lambda i: (i, 0)),
        ),
        compiler_params=pltpu.CompilerParams(
            dimension_semantics=("parallel",),      # v7x: shard row grid across both TCs
            vmem_limit_bytes=32 * 1024 * 1024,      # safe on v5e/v6e/v7x scoped limits
        ),
    )(x2, a2, b2)

    return out.reshape(B, T, D)


def layer_norm_temporal_ref(x, alpha, beta, epsilon=1e-5):
    mean = jnp.mean(x, axis=-1, keepdims=True)
    var = jnp.mean((x - mean) ** 2, axis=-1, keepdims=True)
    std = jnp.sqrt(var + epsilon)
    return (x - mean) / std * alpha + beta


if __name__ == "__main__":
    key = jax.random.PRNGKey(0)
    B, T, D = 2, 8, 32
    # TODO(synk): D=32 is lane-starved (only 32/128 lanes used); production shapes
    # with D >= 128 get full-width unmasked vld/vst streams.

    x = jax.random.normal(key, (B, T, D), dtype=jnp.float32)
    # Deterministic parameter init, matching nn.Parameter(ones)/nn.Parameter(zeros)
    alpha = jnp.ones((1, 1, D), dtype=jnp.float32)
    beta = jnp.zeros((1, 1, D), dtype=jnp.float32)

    y = layer_norm_temporal(x, alpha, beta, epsilon=1e-5)
    y = jax.block_until_ready(y)

    y_ref = layer_norm_temporal_ref(x, alpha, beta, epsilon=1e-5)
    assert y.shape == (B, T, D)
    assert jnp.allclose(y, y_ref, atol=1e-5, rtol=1e-5), "mismatch vs reference"

    print("KERNEL_OK")
</pallas_src>

<mosaic_0001>
module attributes {stable_mosaic.version = 11 : i64} {
  func.func @_layernorm_kernel(%arg0: i32, %arg1: memref<16x32xf32, #tpu.memory_space<vmem>>, %arg2: memref<1x32xf32, #tpu.memory_space<vmem>>, %arg3: memref<1x32xf32, #tpu.memory_space<vmem>>, %arg4: memref<16x32xf32, #tpu.memory_space<vmem>>) attributes {dimension_semantics = [#tpu.dimension_semantics<parallel>], iteration_bounds = array<i64: 1>, scalar_prefetch = 0 : i64, scratch_operands = 0 : i64, tpu.core_type = #tpu.core_type<tc>, window_params = [{transform_indices = @transform_0, window_bounds = array<i64: 16, 32>}, {pipeline_mode = #tpu.pipeline_mode<synchronous>, transform_indices = @transform_1, window_bounds = array<i64: 1, 32>}, {pipeline_mode = #tpu.pipeline_mode<synchronous>, transform_indices = @transform_2, window_bounds = array<i64: 1, 32>}, {transform_indices = @transform_3, window_bounds = array<i64: 16, 32>}]} {
    %c0 = arith.constant 0 : index
    %c0_0 = arith.constant 0 : index
    %0 = vector.load %arg1[%c0, %c0_0] : memref<16x32xf32, #tpu.memory_space<vmem>>, vector<16x32xf32>
    %c0_1 = arith.constant 0 : index
    %c0_2 = arith.constant 0 : index
    %1 = vector.load %arg2[%c0_1, %c0_2] : memref<1x32xf32, #tpu.memory_space<vmem>>, vector<1x32xf32>
    %c0_3 = arith.constant 0 : index
    %c0_4 = arith.constant 0 : index
    %2 = vector.load %arg3[%c0_3, %c0_4] : memref<1x32xf32, #tpu.memory_space<vmem>>, vector<1x32xf32>
    %cst = arith.constant dense<0.000000e+00> : vector<16xf32>
    %3 = vector.multi_reduction <add>, %0, %cst [1] : vector<16x32xf32> to vector<16xf32>
    %4 = vector.shape_cast %3 : vector<16xf32> to vector<16x1xf32>
    %cst_5 = arith.constant 3.125000e-02 : f32
    %5 = vector.broadcast %cst_5 : f32 to vector<16x1xf32>
    %6 = arith.mulf %4, %5 : vector<16x1xf32>
    %7 = arith.mulf %0, %0 : vector<16x32xf32>
    %cst_6 = arith.constant dense<0.000000e+00> : vector<16xf32>
    %8 = vector.multi_reduction <add>, %7, %cst_6 [1] : vector<16x32xf32> to vector<16xf32>
    %9 = vector.shape_cast %8 : vector<16xf32> to vector<16x1xf32>
    %cst_7 = arith.constant 3.125000e-02 : f32
    %10 = vector.broadcast %cst_7 : f32 to vector<16x1xf32>
    %11 = arith.mulf %9, %10 : vector<16x1xf32>
    %12 = arith.mulf %6, %6 : vector<16x1xf32>
    %13 = arith.subf %11, %12 : vector<16x1xf32>
    %cst_8 = arith.constant 0.000000e+00 : f32
    %14 = vector.broadcast %cst_8 : f32 to vector<16x1xf32>
    %15 = arith.maximumf %13, %14 : vector<16x1xf32>
    %cst_9 = arith.constant 9.99999974E-6 : f32
    %16 = vector.broadcast %cst_9 : f32 to vector<16x1xf32>
    %17 = arith.addf %15, %16 : vector<16x1xf32>
    %18 = math.rsqrt %17 : vector<16x1xf32>
    %19 = vector.broadcast %6 : vector<16x1xf32> to vector<16x32xf32>
    %20 = arith.subf %0, %19 : vector<16x32xf32>
    %21 = vector.broadcast %18 : vector<16x1xf32> to vector<16x32xf32>
    %22 = arith.mulf %20, %21 : vector<16x32xf32>
    %23 = vector.broadcast %1 : vector<1x32xf32> to vector<16x32xf32>
    %24 = arith.mulf %22, %23 : vector<16x32xf32>
    %25 = vector.broadcast %2 : vector<1x32xf32> to vector<16x32xf32>
    %26 = arith.addf %24, %25 : vector<16x32xf32>
    %c0_10 = arith.constant 0 : index
    %c0_11 = arith.constant 0 : index
    %27 = vector.load %arg4[%c0_10, %c0_11] : memref<16x32xf32, #tpu.memory_space<vmem>>, vector<16x32xf32>
    tpu.vector_store %arg4[%c0_10, %c0_11], %26 {strides = array<i32>} : memref<16x32xf32, #tpu.memory_space<vmem>>, vector<16x32xf32>,
    return
  }
  func.func @transform_0(%arg0: i32) -> (i32, i32) {
    %c0_i32 = arith.constant 0 : i32
    %c0_i32_0 = arith.constant 0 : i32
    return %arg0, %c0_i32 : i32, i32
  }
  func.func @transform_1(%arg0: i32) -> (i32, i32) {
    %c0_i32 = arith.constant 0 : i32
    %c0_i32_0 = arith.constant 0 : i32
    %c0_i32_1 = arith.constant 0 : i32
    return %c0_i32, %c0_i32_0 : i32, i32
  }
  func.func @transform_2(%arg0: i32) -> (i32, i32) {
    %c0_i32 = arith.constant 0 : i32
    %c0_i32_0 = arith.constant 0 : i32
    %c0_i32_1 = arith.constant 0 : i32
    return %c0_i32, %c0_i32_0 : i32, i32
  }
  func.func @transform_3(%arg0: i32) -> (i32, i32) {
    %c0_i32 = arith.constant 0 : i32
    %c0_i32_0 = arith.constant 0 : i32
    return %arg0, %c0_i32 : i32, i32
  }
}

</mosaic_0001>

<llo_original>
// kernel: tpu_custom_call.1
$region0: #{tpu_custom_call.1}
  #allocation0 [shape = 'u32[]', space=smem, size = 0x4, offset = 0x4, fixed_abs, tag = 'smem constant byte address 0x4 - core index']
  #allocation1 [shape = 'u32[144,128]{1,0:T(1,128)}', space=vmem, size = 0x12000, scoped, tag = 'internal scratch']
  %s0 = inlined_call_operand.hbm [shape: f32[16,32], index: 0, kind: input, shape index: {}]
  %s1 = inlined_call_operand.vmem [shape: f32[1,32], index: 1, kind: input, shape index: {}]
  %s2 = inlined_call_operand.vmem [shape: f32[1,32], index: 2, kind: input, shape index: {}]
  %s3 = inlined_call_operand.hbm [shape: f32[16,32], index: 3, kind: output, shape index: {}]
  %s4 = sld [smem:[#allocation0]]
  $region26: #{tpu_custom_call.1} parent=0
    _
  %s6 = ssub.s32 1, %s4
  %s7 = scalar_select 0, %s6, %s4
  $region1: #{tpu_custom_call.1} parent=0
    #allocation2 [shape = 'u8[8192]{0}', space=vmem, size = 0x2000, scoped, tag = 'input window, operand 0, single buffered']
    #allocation3 [shape = 's32[1]{0}', space=sflag, size = 0x4, scoped, tag = 'scoped memory for tpu_custom_call.1']
    #allocation4 [shape = 's32[1]{0}', space=sflag, size = 0x4, scoped, tag = 'scoped memory for tpu_custom_call.1']
    #allocation5 [shape = 'u8[8192]{0}', space=vmem, size = 0x2000, scoped, tag = 'output window, operand 0, single buffered']
    %8 = vsyncpa [#allocation3], 0
    %9 = vsyncpa [#allocation4], 0
    // Predicated region
    $region2: #{tpu_custom_call.1} parent=1 // pred_check
      _
    $region3: #{tpu_custom_call.1} parent=1 // pred_check_branch
      %11 = sbr.rel (0) target = $region5
    $region4: #{tpu_custom_call.1} parent=1 // pred_region
      %s13 = ssub.s32 256, 256
      %14 = vsyncadd [#allocation3], %s13
      %s15 = sshll.u32 [#allocation2], 4
      %s16 = int_to_ptr.vmem [resolvable:$true] %s15
      %21 = dma.hbm_to_vmem [thread:$0]  %s0, 256, %s16, [#allocation3], 128, 128, 8
    $region5: #{tpu_custom_call.1} parent=1 // pred_fallthru
      _
    // Predicated region
    $region6: #{tpu_custom_call.1} parent=1 // pred_check
      _
    $region7: #{tpu_custom_call.1} parent=1 // pred_check_branch
      %23 = sbr.rel (0) target = $region9
    $region8: #{tpu_custom_call.1} parent=1 // pred_region
      _
    $region9: #{tpu_custom_call.1} parent=1 // pred_fallthru
      _
    // Predicated region
    $region10: #{tpu_custom_call.1} parent=1 // pred_check
      _
    $region11: #{tpu_custom_call.1} parent=1 // pred_check_branch
      %25 = sbr.rel (0) target = $region13
    $region12: #{tpu_custom_call.1} parent=1 // pred_region
      _
    $region13: #{tpu_custom_call.1} parent=1 // pred_fallthru
      _
    // Predicated region
    $region14: #{tpu_custom_call.1} parent=1 // pred_check
      _
    $region15: #{tpu_custom_call.1} parent=1 // pred_check_branch
      %27 = sbr.rel (0) target = $region17
    $region16: #{tpu_custom_call.1} parent=1 // pred_region
      %28 = dma.done [#allocation3], 256
    $region17: #{tpu_custom_call.1} parent=1 // pred_fallthru
      _
    %v29 = vld [vmem:[#allocation2] sm:$0xff]
    %v30 = vld [vmem:[#allocation2 + $0x8] sm:$0xff]
    %v31 = vld [vmem:[%s1] sm:$0x1]
    %v32 = vld [vmem:[%s2] sm:$0x1]
    %vm33 = vcmask 261120
    %v34 = vsel %vm33, %v29, 0.0
    %35 = vadd.xlane.f32.xlu0 %v34
    %v36 = vpop.xlane.xlu0 %35
    %v37 = vsel %vm33, %v30, 0.0
    %38 = vadd.xlane.f32.xlu0 %v37
    %v39 = vpop.xlane.xlu0 %38
    %v40 = vmul.f32 %v36, 0.03125
    %v41 = vmul.f32 %v39, 0.03125
    %v42 = vmul.f32 %v29, %v29
    %v43 = vmul.f32 %v30, %v30
    %v44 = vsel %vm33, %v42, 0.0
    %45 = vadd.xlane.f32.xlu0 %v44
    %v46 = vpop.xlane.xlu0 %45
    %v47 = vsel %vm33, %v43, 0.0
    %48 = vadd.xlane.f32.xlu0 %v47
    %v49 = vpop.xlane.xlu0 %48
    %v50 = vmul.f32 %v46, 0.03125
    %v51 = vmul.f32 %v49, 0.03125
    %v52 = vmul.f32 %v40, %v40
    %v53 = vmul.f32 %v41, %v41
    %v54 = vsub.f32 %v50, %v52
    %v55 = vsub.f32 %v51, %v53
    %v56 = vmax.f32 %v54, 0.0
    %v57 = vmax.f32 %v55, 0.0
    %v58 = vadd.f32 %v56, 1e-05
    %v59 = vadd.f32 %v57, 1e-05
    %v60 = vrsqrt.pop %v58
    %v61 = vrsqrt.pop %v59
    %v62 = vsub.f32 %v29, %v40
    %v63 = vsub.f32 %v30, %v41
    %v64 = vmul.f32 %v62, %v60
    %v65 = vmul.f32 %v63, %v61
    %v67 = vlaneseq
    %v68 = vshrl.u32 %v67, 7
    %v69 = vsub.s32 0, %v68
    %v70 = vrot.slane %v31, %v69
    %v72 = vmul.f32 %v64, %v70
    %v73 = vmul.f32 %v65, %v70
    %v75 = vlaneseq
    %v76 = vshrl.u32 %v75, 7
    %v77 = vsub.s32 0, %v76
    %v78 = vrot.slane %v32, %v77
    %v80 = vadd.f32 %v72, %v78
    %v81 = vadd.f32 %v73, %v78
    %82 = vst.msk [vmem:[#allocation5] sm:$0xff] %vm33, %v80
    %83 = vst.msk [vmem:[#allocation5 + $0x8] sm:$0xff] %vm33, %v81
    // Predicated region
    $region18: #{tpu_custom_call.1} parent=1 // pred_check
      _
    $region19: #{tpu_custom_call.1} parent=1 // pred_check_branch
      %85 = sbr.rel (0) target = $region21
    $region20: #{tpu_custom_call.1} parent=1 // pred_region
      %s87 = ssub.s32 256, 256
      %88 = vsyncadd [#allocation4], %s87
      %s89 = sshll.u32 [#allocation5], 4
      %s90 = int_to_ptr.vmem [resolvable:$true] %s89
      %95 = dma.vmem_to_hbm [thread:$0]  %s90, 256, %s3, [#allocation4], 128, 128, 8
    $region21: #{tpu_custom_call.1} parent=1 // pred_fallthru
      _
    // Predicated region
    $region22: #{tpu_custom_call.1} parent=1 // pred_check
      _
    $region23: #{tpu_custom_call.1} parent=1 // pred_check_branch
      %97 = sbr.rel (0) target = $region25
    $region24: #{tpu_custom_call.1} parent=1 // pred_region
      %98 = dma.done [#allocation4], 256
    $region25: #{tpu_custom_call.1} parent=1 // pred_fallthru
      _
    %99 = vsyncpa [#allocation3], 1
    %100 = vsyncpa [#allocation4], 1

</llo_original>
